<compile_context>
chip_gen: v5e
topology: v5e:2x2
jax: 0.10.0
libtpu: 0.0.40
codegen_flags: <defaults>
</compile_context>

<pallas_src>
import functools

import jax
import jax.numpy as jnp
from jax.experimental import pallas as pl
from jax.experimental.pallas import tpu as pltpu

LANE = 128
SUBLANE = 8


def _round_up(x, m):
    return (x + m - 1) // m * m


def _linear_kernel(x_ref, w_ref, b_ref, o_ref):
    # x_ref: (tile_b, D) f32 | w_ref: (D, C_pad) bf16 | b_ref: (1, C) f32
    # o_ref: (tile_b, C) with C = class_num (<= C_pad)
    acc = jnp.dot(x_ref[...].astype(w_ref.dtype), w_ref[...],
                  preferred_element_type=jnp.float32)
    c = o_ref.shape[-1]
    o_ref[...] = (acc[:, :c] + b_ref[...]).astype(o_ref.dtype)


def prepare_params(weight, bias):
    """One-time parameter prep (off the per-call path).

    weight: (C, D) PyTorch layout -> (D, C_pad) bf16, lane-dense, zero-padded.
    bias:   (C,)                  -> (1, C) f32 (added after the f32 accumulate).
    """
    C, D = weight.shape
    C_pad = _round_up(C, LANE)
    w_dc = (jnp.zeros((D, C_pad), jnp.bfloat16)
            .at[:, :C].set(weight.T.astype(jnp.bfloat16)))
    b2 = bias.reshape(1, C).astype(jnp.float32)
    return w_dc, b2


def _tile_b_cap(D, C, w_bytes, budget_bytes=12 << 20):
    """Largest batch tile whose double-buffered x/out tiles plus the resident W
    fit a conservative VMEM budget (under the 16 MiB v5e scoped default)."""
    avail = budget_bytes - w_bytes - 4096          # bias + slack
    per_row = 2 * 4 * (D + C)                      # 2 buffers x f32 (x row + out row)
    cap = avail // per_row if avail > 0 else SUBLANE
    cap = max(SUBLANE, (cap // SUBLANE) * SUBLANE)
    return min(cap, 2048)


def _choose_tile_b(B, cap):
    if B <= cap:
        if B >= 2 * SUBLANE:
            # Prefer >=2 grid steps so v7x's two TensorCores both get work.
            half = _round_up(-(-B // 2), SUBLANE)
            if half < B:
                return half
        return B                                   # single full-extent block (no padding)
    # Large batch: balanced chunks near the cap to minimise ragged-tail waste.
    n_chunks = -(-B // cap)
    return _round_up(-(-B // n_chunks), SUBLANE)


@functools.partial(jax.jit, static_argnames=("tile_b",))
def feat_classifier_forward(x, w_dc, b2, *, tile_b=None):
    """x: (B, D); w_dc: (D, C_pad) bf16 prepared; b2: (1, C) f32 prepared.

    Returns (B, C) logits in x.dtype.
    """
    B, D = x.shape
    C = b2.shape[1]
    C_pad = w_dc.shape[1]
    assert w_dc.shape[0] == D and C <= C_pad

    # TODO(synk): for very large class_num (resident W exceeding the VMEM
    # budget) add a second grid axis over C (W blocked (D, tile_c)) instead of
    # keeping W fully resident.
    cap = _tile_b_cap(D, C, w_dc.size * w_dc.dtype.itemsize)
    if tile_b is None:
        tile_b = _choose_tile_b(B, cap)
    else:
        tile_b = _round_up(max(int(tile_b), 1), SUBLANE)
        if tile_b >= B:
            tile_b = B                             # full-extent block is always legal

    grid = (pl.cdiv(B, tile_b),)

    return pl.pallas_call(
        _linear_kernel,
        out_shape=jax.ShapeDtypeStruct((B, C), x.dtype),
        grid=grid,
        in_specs=[
            pl.BlockSpec((tile_b, D), lambda i: (i, 0)),   # pipelined x tiles
            pl.BlockSpec((D, C_pad), lambda i: (0, 0)),    # resident weight (bf16)
            pl.BlockSpec((1, C), lambda i: (0, 0)),        # resident bias (f32)
        ],
        out_specs=pl.BlockSpec((tile_b, C), lambda i: (i, 0)),
        compiler_params=pltpu.CompilerParams(
            dimension_semantics=("parallel",)),
    )(x, w_dc, b2)


def init_params(key, class_num, bottleneck_dim):
    # init_weights for Linear: xavier_normal_ on weight, zeros on bias.
    std = (2.0 / (bottleneck_dim + class_num)) ** 0.5
    w = jax.random.normal(key, (class_num, bottleneck_dim), jnp.float32) * std
    b = jnp.zeros((class_num,), jnp.float32)
    return w, b


if __name__ == "__main__":
    key = jax.random.PRNGKey(0)
    k_x, k_w = jax.random.split(key)

    batch = 4
    bottleneck_dim = 256
    class_num = 10

    x = jax.random.normal(k_x, (batch, bottleneck_dim), jnp.float32)
    weight, bias = init_params(k_w, class_num, bottleneck_dim)

    # One-time parameter prep (transpose + lane padding + bf16); not per-call.
    w_dc, b2 = prepare_params(weight, bias)

    out = feat_classifier_forward(x, w_dc, b2)
    out = jax.block_until_ready(out)

    # Reference check in plain JAX (f32). Kernel uses bf16 inputs with f32
    # accumulate, so use a correspondingly loosened tolerance.
    ref = x @ weight.T + bias
    assert out.shape == (batch, class_num)
    err = float(jnp.max(jnp.abs(out - ref)))
    assert jnp.allclose(out, ref, atol=5e-2, rtol=5e-2), err

    print("KERNEL_OK")
</pallas_src>

<mosaic_0001>
module attributes {stable_mosaic.version = 11 : i64} {
  func.func @_linear_kernel(%arg0: i32, %arg1: memref<4x256xf32, #tpu.memory_space<vmem>>, %arg2: memref<256x128xbf16, #tpu.memory_space<vmem>>, %arg3: memref<1x10xf32, #tpu.memory_space<vmem>>, %arg4: memref<4x10xf32, #tpu.memory_space<vmem>>) attributes {dimension_semantics = [#tpu.dimension_semantics<parallel>], iteration_bounds = array<i64: 1>, scalar_prefetch = 0 : i64, scratch_operands = 0 : i64, tpu.core_type = #tpu.core_type<tc>, window_params = [{transform_indices = @transform_0, window_bounds = array<i64: 4, 256>}, {pipeline_mode = #tpu.pipeline_mode<synchronous>, transform_indices = @transform_1, window_bounds = array<i64: 256, 128>}, {pipeline_mode = #tpu.pipeline_mode<synchronous>, transform_indices = @transform_2, window_bounds = array<i64: 1, 10>}, {transform_indices = @transform_3, window_bounds = array<i64: 4, 10>}]} {
    %c0 = arith.constant 0 : index
    %c0_0 = arith.constant 0 : index
    %0 = vector.load %arg1[%c0, %c0_0] : memref<4x256xf32, #tpu.memory_space<vmem>>, vector<4x256xf32>
    %1 = arith.truncf %0 : vector<4x256xf32> to vector<4x256xbf16>
    %c0_1 = arith.constant 0 : index
    %c0_2 = arith.constant 0 : index
    %2 = vector.load %arg2[%c0_1, %c0_2] : memref<256x128xbf16, #tpu.memory_space<vmem>>, vector<256x128xbf16>
    %cst = arith.constant dense<0.000000e+00> : vector<4x128xf32>
    %3 = tpu.matmul %1, %2, %cst {dimension_numbers = #tpu.dot_dimension_numbers<[1], [0], [0], [1], [0, 0, 1, 1], [], []>} : vector<4x256xbf16>, vector<256x128xbf16>, vector<4x128xf32> -> vector<4x128xf32>
    %4 = vector.extract_strided_slice %3 {offsets = [0, 0], sizes = [4, 10], strides = [1, 1]} : vector<4x128xf32> to vector<4x10xf32>
    %c0_3 = arith.constant 0 : index
    %c0_4 = arith.constant 0 : index
    %5 = vector.load %arg3[%c0_3, %c0_4] : memref<1x10xf32, #tpu.memory_space<vmem>>, vector<1x10xf32>
    %6 = vector.broadcast %5 : vector<1x10xf32> to vector<4x10xf32>
    %7 = arith.addf %4, %6 : vector<4x10xf32>
    %c0_5 = arith.constant 0 : index
    %c0_6 = arith.constant 0 : index
    %8 = vector.load %arg4[%c0_5, %c0_6] : memref<4x10xf32, #tpu.memory_space<vmem>>, vector<4x10xf32>
    tpu.vector_store %arg4[%c0_5, %c0_6], %7 {strides = array<i32>} : memref<4x10xf32, #tpu.memory_space<vmem>>, vector<4x10xf32>,
    return
  }
  func.func @transform_0(%arg0: i32) -> (i32, i32) {
    %c0_i32 = arith.constant 0 : i32
    %c0_i32_0 = arith.constant 0 : i32
    return %arg0, %c0_i32 : i32, i32
  }
  func.func @transform_1(%arg0: i32) -> (i32, i32) {
    %c0_i32 = arith.constant 0 : i32
    %c0_i32_0 = arith.constant 0 : i32
    %c0_i32_1 = arith.constant 0 : i32
    return %c0_i32, %c0_i32_0 : i32, i32
  }
  func.func @transform_2(%arg0: i32) -> (i32, i32) {
    %c0_i32 = arith.constant 0 : i32
    %c0_i32_0 = arith.constant 0 : i32
    %c0_i32_1 = arith.constant 0 : i32
    return %c0_i32, %c0_i32_0 : i32, i32
  }
  func.func @transform_3(%arg0: i32) -> (i32, i32) {
    %c0_i32 = arith.constant 0 : i32
    %c0_i32_0 = arith.constant 0 : i32
    return %arg0, %c0_i32 : i32, i32
  }
}

</mosaic_0001>

<llo_original>
// kernel: feat_classifier_forward.1
$region0: #{feat_classifier_forward.1}
  #allocation0 [shape = 'u32[]', space=smem, size = 0x4, offset = 0x4, fixed_abs, tag = 'smem constant byte address 0x4 - core index']
  #allocation1 [shape = 'u32[72,128]{1,0:T(1,128)}', space=vmem, size = 0x9000, scoped, tag = 'internal scratch']
  %s0 = inlined_call_operand.hbm [shape: f32[4,256], index: 0, kind: input, shape index: {}]
  %s1 = inlined_call_operand.hbm [shape: bf16[256,128], index: 1, kind: input, shape index: {}]
  %s2 = inlined_call_operand.vmem [shape: f32[1,10], index: 2, kind: input, shape index: {}]
  %s3 = inlined_call_operand.hbm [shape: f32[4,10], index: 3, kind: output, shape index: {}]
  %s4 = sld [smem:[#allocation0]]
  $region30: #{feat_classifier_forward.1} parent=0
    _
  %s6 = ssub.s32 1, %s4
  %s7 = scalar_select 0, %s6, %s4
  $region1: #{feat_classifier_forward.1} parent=0
    #allocation2 [shape = 'u8[4096]{0}', space=vmem, size = 0x1000, scoped, tag = 'input window, operand 0, single buffered']
    #allocation3 [shape = 's32[1]{0}', space=sflag, size = 0x4, scoped, tag = 'scoped memory for feat_classifier_forward.1']
    #allocation4 [shape = 's32[1]{0}', space=sflag, size = 0x4, scoped, tag = 'scoped memory for feat_classifier_forward.1']
    #allocation5 [shape = 'u8[65536]{0}', space=vmem, size = 0x10000, scoped, tag = 'input window, operand 1, single buffered']
    #allocation6 [shape = 's32[1]{0}', space=sflag, size = 0x4, scoped, tag = 'scoped memory for feat_classifier_forward.1']
    #allocation7 [shape = 'u8[2048]{0}', space=vmem, size = 0x800, scoped, tag = 'output window, operand 0, single buffered']
    %8 = vsyncpa [#allocation3], 0
    %9 = vsyncpa [#allocation6], 0
    %10 = vsyncpa [#allocation4], 0
    // Predicated region
    $region2: #{feat_classifier_forward.1} parent=1 // pred_check
      _
    $region3: #{feat_classifier_forward.1} parent=1 // pred_check_branch
      %12 = sbr.rel (0) target = $region5
    $region4: #{feat_classifier_forward.1} parent=1 // pred_region
      %14 = vsyncadd [#allocation3], 0
      %s16 = sshll.u32 %s0, 4
      %s17 = int_to_ptr.hbm [resolvable:$true] %s16
      %s18 = sshll.u32 [#allocation2], 4
      %s19 = int_to_ptr.vmem [resolvable:$true] %s18
      %21 = dma.hbm_to_vmem [thread:$0]  %s17, 128, %s19, [#allocation3]
    $region5: #{feat_classifier_forward.1} parent=1 // pred_fallthru
      _
    // Predicated region
    $region6: #{feat_classifier_forward.1} parent=1 // pred_check
      _
    $region7: #{feat_classifier_forward.1} parent=1 // pred_check_branch
      %23 = sbr.rel (0) target = $region9
    $region8: #{feat_classifier_forward.1} parent=1 // pred_region
      %25 = vsyncadd [#allocation6], 0
      %s26 = sshll.u32 %s1, 4
      %s27 = int_to_ptr.hbm [resolvable:$true] %s26
      %s28 = sshll.u32 [#allocation5], 4
      %s29 = int_to_ptr.vmem [resolvable:$true] %s28
      %34 = dma.hbm_to_vmem [thread:$0]  %s27, 2048, %s29, [#allocation6], 64, 64, 4
    $region9: #{feat_classifier_forward.1} parent=1 // pred_fallthru
      _
    // Predicated region
    $region10: #{feat_classifier_forward.1} parent=1 // pred_check
      _
    $region11: #{feat_classifier_forward.1} parent=1 // pred_check_branch
      %36 = sbr.rel (0) target = $region13
    $region12: #{feat_classifier_forward.1} parent=1 // pred_region
      _
    $region13: #{feat_classifier_forward.1} parent=1 // pred_fallthru
      _
    // Predicated region
    $region14: #{feat_classifier_forward.1} parent=1 // pred_check
      _
    $region15: #{feat_classifier_forward.1} parent=1 // pred_check_branch
      %38 = sbr.rel (0) target = $region17
    $region16: #{feat_classifier_forward.1} parent=1 // pred_region
      %40 = dma.done [#allocation3], 128
    $region17: #{feat_classifier_forward.1} parent=1 // pred_fallthru
      _
    // Predicated region
    $region18: #{feat_classifier_forward.1} parent=1 // pred_check
      _
    $region19: #{feat_classifier_forward.1} parent=1 // pred_check_branch
      %42 = sbr.rel (0) target = $region21
    $region20: #{feat_classifier_forward.1} parent=1 // pred_region
      %44 = dma.done [#allocation6], 2048
    $region21: #{feat_classifier_forward.1} parent=1 // pred_fallthru
      _
    %v45 = vld [vmem:[#allocation2] sm:$0xff]
    %47 = vst [vmem:[#allocation1] ss:$2 sm:$0xff] %v45
    %v48 = vld.sshfl [vmem:[#allocation1] sm:$0xff pattern:$0x75316420]
    %v49 = vld.sshfl [vmem:[#allocation1 + $0x8] sm:$0xff pattern:$0x75316420]
    %v52 = vpack.c.bf16 %v48, %v48
    %v53 = vpack.c.bf16 %v49, %v49
    %v54 = vld [vmem:[#allocation5] sm:$0xf]
    %v55 = vld [vmem:[#allocation5 + $0x4] sm:$0xf]
    %v56 = vld [vmem:[#allocation5 + $0x8] sm:$0xf]
    %v57 = vld [vmem:[#allocation5 + $0xc] sm:$0xf]
    %v58 = vld [vmem:[#allocation5 + $0x10] sm:$0xf]
    %v59 = vld [vmem:[#allocation5 + $0x14] sm:$0xf]
    %v60 = vld [vmem:[#allocation5 + $0x18] sm:$0xf]
    %v61 = vld [vmem:[#allocation5 + $0x1c] sm:$0xf]
    %v62 = vld [vmem:[#allocation5 + $0x20] sm:$0xf]
    %v63 = vld [vmem:[#allocation5 + $0x24] sm:$0xf]
    %v64 = vld [vmem:[#allocation5 + $0x28] sm:$0xf]
    %v65 = vld [vmem:[#allocation5 + $0x2c] sm:$0xf]
    %v66 = vld [vmem:[#allocation5 + $0x30] sm:$0xf]
    %v67 = vld [vmem:[#allocation5 + $0x34] sm:$0xf]
    %v68 = vld [vmem:[#allocation5 + $0x38] sm:$0xf]
    %v69 = vld [vmem:[#allocation5 + $0x3c] sm:$0xf]
    %v70 = vld [vmem:[#allocation5 + $0x40] sm:$0xf]
    %v71 = vld [vmem:[#allocation5 + $0x44] sm:$0xf]
    %v72 = vld [vmem:[#allocation5 + $0x48] sm:$0xf]
    %v73 = vld [vmem:[#allocation5 + $0x4c] sm:$0xf]
    %v74 = vld [vmem:[#allocation5 + $0x50] sm:$0xf]
    %v75 = vld [vmem:[#allocation5 + $0x54] sm:$0xf]
    %v76 = vld [vmem:[#allocation5 + $0x58] sm:$0xf]
    %v77 = vld [vmem:[#allocation5 + $0x5c] sm:$0xf]
    %v78 = vld [vmem:[#allocation5 + $0x60] sm:$0xf]
    %v79 = vld [vmem:[#allocation5 + $0x64] sm:$0xf]
    %v80 = vld [vmem:[#allocation5 + $0x68] sm:$0xf]
    %v81 = vld [vmem:[#allocation5 + $0x6c] sm:$0xf]
    %v82 = vld [vmem:[#allocation5 + $0x70] sm:$0xf]
    %v83 = vld [vmem:[#allocation5 + $0x74] sm:$0xf]
    %v84 = vld [vmem:[#allocation5 + $0x78] sm:$0xf]
    %v85 = vld [vmem:[#allocation5 + $0x7c] sm:$0xf]
    %v118 = vunpack.c.l.b16 %v54
    %v119 = vunpack.c.l.b16 %v55
    %v120 = vunpack.c.l.b16 %v56
    %v121 = vunpack.c.l.b16 %v57
    %v122 = vunpack.c.l.b16 %v58
    %v123 = vunpack.c.l.b16 %v59
    %v124 = vunpack.c.l.b16 %v60
    %v125 = vunpack.c.l.b16 %v61
    %v126 = vunpack.c.l.b16 %v62
    %v127 = vunpack.c.l.b16 %v63
    %v128 = vunpack.c.l.b16 %v64
    %v129 = vunpack.c.l.b16 %v65
    %v130 = vunpack.c.l.b16 %v66
    %v131 = vunpack.c.l.b16 %v67
    %v132 = vunpack.c.l.b16 %v68
    %v133 = vunpack.c.l.b16 %v69
    %v134 = vunpack.c.l.b16 %v70
    %v135 = vunpack.c.l.b16 %v71
    %v136 = vunpack.c.l.b16 %v72
    %v137 = vunpack.c.l.b16 %v73
    %v138 = vunpack.c.l.b16 %v74
    %v139 = vunpack.c.l.b16 %v75
    %v140 = vunpack.c.l.b16 %v76
    %v141 = vunpack.c.l.b16 %v77
    %v142 = vunpack.c.l.b16 %v78
    %v143 = vunpack.c.l.b16 %v79
    %v144 = vunpack.c.l.b16 %v80
    %v145 = vunpack.c.l.b16 %v81
    %v146 = vunpack.c.l.b16 %v82
    %v147 = vunpack.c.l.b16 %v83
    %v148 = vunpack.c.l.b16 %v84
    %v149 = vunpack.c.l.b16 %v85
    %v150 = vpack.c.b16 %v119, %v118
    %v151 = vpack.c.b16 %v121, %v120
    %v152 = vpack.c.b16 %v123, %v122
    %v153 = vpack.c.b16 %v125, %v124
    %v154 = vpack.c.b16 %v127, %v126
    %v155 = vpack.c.b16 %v129, %v128
    %v156 = vpack.c.b16 %v131, %v130
    %v157 = vpack.c.b16 %v133, %v132
    %v158 = vpack.c.b16 %v135, %v134
    %v159 = vpack.c.b16 %v137, %v136
    %v160 = vpack.c.b16 %v139, %v138
    %v161 = vpack.c.b16 %v141, %v140
    %v162 = vpack.c.b16 %v143, %v142
    %v163 = vpack.c.b16 %v145, %v144
    %v164 = vpack.c.b16 %v147, %v146
    %v165 = vpack.c.b16 %v149, %v148
    %182 = vmatpush.bf16.msra.mxu0 %v157
    %183 = vmatpush.bf16.msra.mxu0 %v156
    %184 = vmatpush.bf16.msra.mxu0 %v155
    %185 = vmatpush.bf16.msra.mxu0 %v154
    %186 = vmatpush.bf16.msra.mxu0 %v153
    %187 = vmatpush.bf16.msra.mxu0 %v152
    %188 = vmatpush.bf16.msra.mxu0 %v151
    %189 = vmatpush.bf16.msra.mxu0 %v150
    %190 = vmatmul.bf16.gmra.mxu0 %v52
    %v191 = vpop.f32.mrf.mxu0
    %v192 = vadd.f32 0.0, %v191
    %v193 = vpop.f32.mrf.mxu0
    %194 = vdwg.mxu0
    %195 = vmatpush.bf16.msra.mxu0 %v165
    %196 = vmatpush.bf16.msra.mxu0 %v164
    %197 = vmatpush.bf16.msra.mxu0 %v163
    %198 = vmatpush.bf16.msra.mxu0 %v162
    %199 = vmatpush.bf16.msra.mxu0 %v161
    %200 = vmatpush.bf16.msra.mxu0 %v160
    %201 = vmatpush.bf16.msra.mxu0 %v159
    %202 = vmatpush.bf16.msra.mxu0 %v158
    %203 = vmatmul.bf16.gmra.mxu0 %v53
    %v204 = vpop.f32.mrf.mxu0
    %v205 = vadd.f32 %v192, %v204
    %v206 = vpop.f32.mrf.mxu0
    %207 = vdwg.mxu0
    %v208 = vld [vmem:[%s2] sm:$0x1]
    %v210 = vperm.slane %v208, 0
    %v212 = vadd.f32 %v205, %v210
    %vm213 = vcmask 76800
    %214 = vst.msk [vmem:[#allocation7] sm:$0xf] %vm213, %v212
    // Predicated region
    $region22: #{feat_classifier_forward.1} parent=1 // pred_check
      _
    $region23: #{feat_classifier_forward.1} parent=1 // pred_check_branch
      %216 = sbr.rel (0) target = $region25
    $region24: #{feat_classifier_forward.1} parent=1 // pred_region
      %218 = vsyncadd [#allocation4], 0
      %s220 = sshll.u32 [#allocation7], 4
      %s221 = int_to_ptr.vmem [resolvable:$true] %s220
      %s222 = sshll.u32 %s3, 4
      %s223 = int_to_ptr.hbm [resolvable:$true] %s222
      %225 = dma.vmem_to_hbm [thread:$0]  %s221, 64, %s223, [#allocation4]
    $region25: #{feat_classifier_forward.1} parent=1 // pred_fallthru
      _
    // Predicated region
    $region26: #{feat_classifier_forward.1} parent=1 // pred_check
      _
    $region27: #{feat_classifier_forward.1} parent=1 // pred_check_branch
      %227 = sbr.rel (0) target = $region29
    $region28: #{feat_classifier_forward.1} parent=1 // pred_region
      %229 = dma.done [#allocation4], 64
    $region29: #{feat_classifier_forward.1} parent=1 // pred_fallthru
      _
    %230 = vsyncpa [#allocation3], 1
    %231 = vsyncpa [#allocation6], 1
    %232 = vsyncpa [#allocation4], 1

</llo_original>
